<compile_context>
chip_gen: v7x
topology: tpu7x:2x2x1
jax: 0.10.0
libtpu: 0.0.40
codegen_flags: <defaults>
</compile_context>

<pallas_src>
import jax
import jax.numpy as jnp
from jax.experimental import pallas as pl
from jax.experimental.pallas import tpu as pltpu


def _mask_bool_kernel(mask_ref, out_ref):
    """out = (mask != 0) stored as int8.  Pure VPU compare + cast, no MXU/XLU."""
    out_ref[...] = (mask_ref[...] != 0).astype(jnp.int8)


def sequence_trimmer_forward(x, v=None, mask=None, uu=None, *,
                             vmem_budget_bytes=8 * 1024 * 1024):
    """JAX/Pallas equivalent of SequenceTrimmer(enabled=False).forward."""
    B, C, L = x.shape

    # mask is None -> torch.ones_like(x[:, :1]).bool() is a constant; no kernel.
    if mask is None:
        return x, v, jnp.ones((B, 1, L), dtype=jnp.bool_), uu

    # Already boolean -> .bool() is the identity; no kernel.
    if mask.dtype == jnp.bool_:
        return x, v, mask, uu

    Bm, Cm, Lm = mask.shape           # module guarantees mask ~ x[:, :1] -> (B, 1, L)
    mask2d = mask.reshape(Bm, Lm)     # squeeze channel: batch -> sublanes, seq -> lanes

    # Bytes touched per batch row inside the kernel (input + int8 output).
    row_bytes = Lm * (mask2d.dtype.itemsize + 1)

    if Bm * row_bytes <= vmem_budget_bytes:
        # Common ParT case: the whole mask fits comfortably in VMEM.  Use a
        # single full-array block (exempt from the (8,128) divisibility rule),
        # which avoids the pad/slice copies entirely.
        TB, B_pad = Bm, Bm
    else:
        # Tile over batch.  Keep the batch tile a multiple of 32 so int8 output
        # packs native (32,128) tiles; size it to half the VMEM budget so the
        # double-buffered pipeline fits.
        per_step = max(1, vmem_budget_bytes // 2)
        TB = max(32, min(1024, (per_step // row_bytes) // 32 * 32))
        B_pad = ((Bm + TB - 1) // TB) * TB

    m2 = mask2d if B_pad == Bm else jnp.pad(mask2d, ((0, B_pad - Bm), (0, 0)))

    mask_i8 = pl.pallas_call(
        _mask_bool_kernel,
        out_shape=jax.ShapeDtypeStruct((B_pad, Lm), jnp.int8),
        grid=(B_pad // TB,),
        in_specs=[pl.BlockSpec((TB, Lm), lambda i: (i, 0))],
        out_specs=pl.BlockSpec((TB, Lm), lambda i: (i, 0)),
        compiler_params=pltpu.CompilerParams(
            dimension_semantics=("parallel",)
        ),
    )(m2)

    mask_i8 = mask_i8 if B_pad == Bm else mask_i8[:Bm]
    mask_bool = mask_i8.astype(jnp.bool_).reshape(Bm, Cm, Lm)

    # x / v / uu pass through unchanged on the disabled forward path.
    # TODO(synk): the enabled/training branch (random quantile target, rand +
    # argsort permutation, gathers, and slicing to a data-dependent maxlen)
    # needs data-dependent output shapes, which have no static-shape Pallas
    # (or jit-able JAX) equivalent; only the default (disabled) path is lowered.
    return x, v, mask_bool, uu


if __name__ == "__main__":
    key = jax.random.PRNGKey(0)
    kx, kv, km, km3, km4 = jax.random.split(key, 5)

    # Small shapes consistent with the module's (batch, channel, sequence) layout.
    B, C, L = 2, 4, 128
    x = jax.random.normal(kx, (B, C, L), dtype=jnp.float32)
    v = jax.random.normal(kv, (B, C, L), dtype=jnp.float32)
    # mask with some padded (zero) entries, like real particle-cloud masks
    mask_in = (jax.random.uniform(km, (B, 1, L)) > 0.3).astype(jnp.float32)

    # Case 1: explicit float mask -> single-block Pallas kernel path
    x_o, v_o, m_o, uu_o = sequence_trimmer_forward(x, v=v, mask=mask_in, uu=None)
    jax.block_until_ready(m_o)
    ref_mask = mask_in != 0.0
    assert m_o.dtype == jnp.bool_ and m_o.shape == (B, 1, L)
    assert bool(jnp.all(m_o == ref_mask))
    assert bool(jnp.all(x_o == x)) and bool(jnp.all(v_o == v)) and uu_o is None

    # Case 2: mask=None (module builds ones_like(x[:, :1]).bool()) -> short-circuit
    x_o2, v_o2, m_o2, uu_o2 = sequence_trimmer_forward(x, v=None, mask=None, uu=None)
    jax.block_until_ready(m_o2)
    assert m_o2.dtype == jnp.bool_ and m_o2.shape == (B, 1, L)
    assert bool(jnp.all(m_o2)) and v_o2 is None and uu_o2 is None
    assert bool(jnp.all(x_o2 == x))

    # Case 3: odd batch / non-128-multiple sequence length (full-array block exemption)
    B3, L3 = 40, 200
    x3 = jax.random.normal(kx, (B3, C, L3), dtype=jnp.float32)
    mask3 = (jax.random.uniform(km3, (B3, 1, L3)) > 0.5).astype(jnp.float32)
    _, _, m_o3, _ = sequence_trimmer_forward(x3, v=None, mask=mask3, uu=None)
    jax.block_until_ready(m_o3)
    assert m_o3.shape == (B3, 1, L3) and m_o3.dtype == jnp.bool_
    assert bool(jnp.all(m_o3 == (mask3 != 0.0)))

    # Case 4: force the tiled + padded multi-block path with a tiny VMEM budget
    B4, L4 = 70, 128
    x4 = jnp.zeros((B4, C, L4), jnp.float32)
    mask4 = (jax.random.uniform(km4, (B4, 1, L4)) > 0.5).astype(jnp.float32)
    _, _, m_o4, _ = sequence_trimmer_forward(x4, v=None, mask=mask4, uu=None,
                                             vmem_budget_bytes=16 * 1024)
    jax.block_until_ready(m_o4)
    assert m_o4.shape == (B4, 1, L4) and m_o4.dtype == jnp.bool_
    assert bool(jnp.all(m_o4 == (mask4 != 0.0)))

    print("KERNEL_OK")
</pallas_src>

<mosaic_0001>
module attributes {stable_mosaic.version = 11 : i64} {
  func.func @_mask_bool_kernel(%arg0: i32, %arg1: memref<2x128xf32, #tpu.memory_space<vmem>>, %arg2: memref<2x128xi8, #tpu.memory_space<vmem>>) attributes {dimension_semantics = [#tpu.dimension_semantics<parallel>], iteration_bounds = array<i64: 1>, scalar_prefetch = 0 : i64, scratch_operands = 0 : i64, tpu.core_type = #tpu.core_type<tc>, window_params = [{transform_indices = @transform_0, window_bounds = array<i64: 2, 128>}, {transform_indices = @transform_1, window_bounds = array<i64: 2, 128>}]} {
    %c0 = arith.constant 0 : index
    %c0_0 = arith.constant 0 : index
    %0 = vector.load %arg1[%c0, %c0_0] : memref<2x128xf32, #tpu.memory_space<vmem>>, vector<2x128xf32>
    %cst = arith.constant 0.000000e+00 : f32
    %1 = vector.broadcast %cst : f32 to vector<2x128xf32>
    %2 = arith.cmpf one, %0, %1 : vector<2x128xf32>
    %3 = arith.extui %2 : vector<2x128xi1> to vector<2x128xi8>
    %c0_1 = arith.constant 0 : index
    %c0_2 = arith.constant 0 : index
    %4 = vector.load %arg2[%c0_1, %c0_2] : memref<2x128xi8, #tpu.memory_space<vmem>>, vector<2x128xi8>
    tpu.vector_store %arg2[%c0_1, %c0_2], %3 {strides = array<i32>} : memref<2x128xi8, #tpu.memory_space<vmem>>, vector<2x128xi8>,
    return
  }
  func.func @transform_0(%arg0: i32) -> (i32, i32) {
    %c0_i32 = arith.constant 0 : i32
    %c0_i32_0 = arith.constant 0 : i32
    return %arg0, %c0_i32 : i32, i32
  }
  func.func @transform_1(%arg0: i32) -> (i32, i32) {
    %c0_i32 = arith.constant 0 : i32
    %c0_i32_0 = arith.constant 0 : i32
    return %arg0, %c0_i32 : i32, i32
  }
}

</mosaic_0001>

<llo_original>
// kernel: tpu_custom_call.1
$region0: #{tpu_custom_call.1}
  #allocation0 [shape = 'u32[]', space=smem, size = 0x4, offset = 0x4, fixed_abs, tag = 'smem constant byte address 0x4 - core index']
  #allocation1 [shape = 'u32[144,128]{1,0:T(1,128)}', space=vmem, size = 0x12000, scoped, tag = 'internal scratch']
  %s0 = inlined_call_operand.hbm [shape: f32[2,128], index: 0, kind: input, shape index: {}]
  %s1 = inlined_call_operand.hbm [shape: s8[2,128], index: 1, kind: output, shape index: {}]
  %s2 = sld [smem:[#allocation0]]
  $region18: #{tpu_custom_call.1} parent=0
    _
  %s4 = ssub.s32 1, %s2
  %s5 = scalar_select 0, %s4, %s2
  $region1: #{tpu_custom_call.1} parent=0
    #allocation2 [shape = 'u8[1024]{0}', space=vmem, size = 0x400, scoped, tag = 'input window, operand 0, single buffered']
    #allocation3 [shape = 's32[1]{0}', space=sflag, size = 0x4, scoped, tag = 'scoped memory for tpu_custom_call.1']
    #allocation4 [shape = 's32[1]{0}', space=sflag, size = 0x4, scoped, tag = 'scoped memory for tpu_custom_call.1']
    #allocation5 [shape = 'u8[512]{0}', space=vmem, size = 0x400, scoped, tag = 'output window, operand 0, single buffered']
    %6 = vsyncpa [#allocation3], 0
    %7 = vsyncpa [#allocation4], 0
    // Predicated region
    $region2: #{tpu_custom_call.1} parent=1 // pred_check
      _
    $region3: #{tpu_custom_call.1} parent=1 // pred_check_branch
      %9 = sbr.rel (0) target = $region5
    $region4: #{tpu_custom_call.1} parent=1 // pred_region
      %s11 = ssub.s32 32, 32
      %12 = vsyncadd [#allocation3], %s11
      %s14 = sshll.u32 [#allocation2], 4
      %s15 = int_to_ptr.vmem [resolvable:$true] %s14
      %17 = dma.hbm_to_vmem [thread:$0]  %s0, 32, %s15, [#allocation3]
    $region5: #{tpu_custom_call.1} parent=1 // pred_fallthru
      _
    // Predicated region
    $region6: #{tpu_custom_call.1} parent=1 // pred_check
      _
    $region7: #{tpu_custom_call.1} parent=1 // pred_check_branch
      %19 = sbr.rel (0) target = $region9
    $region8: #{tpu_custom_call.1} parent=1 // pred_region
      %20 = dma.done [#allocation3], 32
    $region9: #{tpu_custom_call.1} parent=1 // pred_fallthru
      _
    %v23 = vld [vmem:[#allocation2] sm:$0x3]
    %vm24 = vcmp.ne.f32.partialorder %v23, 0.0
    %vm25 = vmpackc.low %vm24, %vm24
    %vm26 = vmpackc.even %vm25, %vm25
    %v27 = vsel %vm26, 16843009, 0
    %vm28 = vcmask 1040384
    %vm29 = vsmask.f32 256
    %vm30 = vmand %vm28, %vm29
    %v31 = vld [vmem:[#allocation5] sm:$0x1]
    %v32 = vsel %vm30, %v27, %v31
    %33 = vst [vmem:[#allocation5] sm:$0x1] %v32
    // Predicated region
    $region10: #{tpu_custom_call.1} parent=1 // pred_check
      _
    $region11: #{tpu_custom_call.1} parent=1 // pred_check_branch
      %35 = sbr.rel (0) target = $region13
    $region12: #{tpu_custom_call.1} parent=1 // pred_region
      %s37 = ssub.s32 16, 16
      %38 = vsyncadd [#allocation4], %s37
      %s40 = sshll.u32 [#allocation5], 4
      %s41 = int_to_ptr.vmem [resolvable:$true] %s40
      %43 = dma.vmem_to_hbm [thread:$0]  %s41, 16, %s1, [#allocation4]
    $region13: #{tpu_custom_call.1} parent=1 // pred_fallthru
      _
    // Predicated region
    $region14: #{tpu_custom_call.1} parent=1 // pred_check
      _
    $region15: #{tpu_custom_call.1} parent=1 // pred_check_branch
      %45 = sbr.rel (0) target = $region17
    $region16: #{tpu_custom_call.1} parent=1 // pred_region
      %46 = dma.done [#allocation4], 16
    $region17: #{tpu_custom_call.1} parent=1 // pred_fallthru
      _
    %47 = vsyncpa [#allocation3], 1
    %48 = vsyncpa [#allocation4], 1

</llo_original>
